<compile_context>
chip_gen: v7x
topology: tpu7x:2x2x1
jax: 0.10.0
libtpu: 0.0.40
codegen_flags: <defaults>
</compile_context>

<pallas_src>
import jax
import jax.numpy as jnp
from jax import lax
from jax.experimental import pallas as pl
from jax.experimental.pallas import tpu as pltpu


def gru_kernel(gi_ref,      # (T, B, 3H) f32 : precomputed x@W_ih + folded biases
               whh_ref,     # (H, 3H)   bf16 : fused recurrent weights [r|z|n]
               b_h_ref,     # (1, 3H)   f32  : [0 | 0 | b_hh_n]
               h_out_ref):  # (B, H)    f32  : output h_T
    T, B, H3 = gi_ref.shape
    H = H3 // 3

    # Tiny weights: keep resident in vregs; hoist the bias broadcast out of the
    # loop (broadcast_in_dim is not CSE'd per iteration).
    whh = whh_ref[...]
    b_h = jnp.broadcast_to(b_h_ref[...], (B, H3))

    # ---- Serial recurrence: one fused MXU pass + 2 EUP pushes per step ----
    def step(t, h):
        gh = jnp.dot(h.astype(whh.dtype), whh,
                     preferred_element_type=jnp.float32) + b_h   # (B, 3H)
        gi = gi_ref[t]                                           # (B, 3H)
        # Fused sigmoid over the packed r|z lanes, tanh over the n lanes.
        rz = jax.nn.sigmoid(gi[:, :2 * H] + gh[:, :2 * H])
        r, z = rz[:, :H], rz[:, H:]
        n = jnp.tanh(gi[:, 2 * H:] + r * gh[:, 2 * H:])          # b_hn inside r*
        return (1.0 - z) * n + z * h

    h0 = jnp.zeros((B, H), jnp.float32)
    h_out_ref[...] = lax.fori_loop(0, T, step, h0, unroll=True)


def rnn_forward(x_ids, emb_table, w_ih, w_hh, b_ih, b_hh, fc_w, fc_b):
    B, T = x_ids.shape
    H = w_hh.shape[0]

    # ---- Wrapper-side precompute (XLA): per-token input projection table ----
    # Valid while vocab * 3H * 4B is small (here 50*96*4 ~ 19 KB); for large
    # vocabularies fall back to gathering embeddings + a fused in-kernel
    # (T*B,E)@(E,3H) prologue matmul.
    # r/z biases pre-folded (b_ih + b_hh); n gate keeps only b_ih because
    # b_hh_n must stay inside the r* multiply (PyTorch GRU semantics).
    bias_i = jnp.concatenate([b_ih[:2 * H] + b_hh[:2 * H],
                              b_ih[2 * H:]]).reshape(1, 3 * H)
    proj_table = emb_table @ w_ih + bias_i                       # (vocab, 3H)
    # Data-dependent row gather stays in XLA; padding_idx=0 falls out because
    # emb row 0 is zero -> proj_table[0] == bias, exactly what the GRU computes
    # for a zero embedding.  Time-major for the kernel.
    gi = jnp.take(proj_table, x_ids, axis=0)                     # (B, T, 3H)
    gi_tb = jnp.transpose(gi, (1, 0, 2))                         # (T, B, 3H)

    # Fused recurrent weights as bf16 (single-pass MXU, f32 accumulation).
    whh = w_hh.astype(jnp.bfloat16)                              # (H, 3H)
    # Recurrent bias slab: zeros on r/z lanes (already folded), b_hh_n on n.
    b_h = jnp.concatenate([jnp.zeros((2 * H,), jnp.float32),
                           b_hh[2 * H:]]).reshape(1, 3 * H)

    vspec = pl.BlockSpec(memory_space=pltpu.MemorySpace.VMEM)
    h_T = pl.pallas_call(
        gru_kernel,
        out_shape=jax.ShapeDtypeStruct((B, H), jnp.float32),
        in_specs=[vspec, vspec, vspec],
        out_specs=vspec,
    )(gi_tb, whh, b_h)

    # Final Linear(H, 1) on the lane-dense hidden state, kept in XLA.
    return (h_T @ fc_w.reshape(H, 1) + fc_b.reshape(1, 1))[:, 0]


def rnn_forward_ref(x_ids, emb_table, w_ih, w_hh, b_ih, b_hh, fc_w, fc_b,
                    *, recurrent_bf16=False):
    """Pure-JAX reference (PyTorch GRU semantics, gate order r,z,n).

    recurrent_bf16=True mirrors the kernel's mixed precision (bf16 operands on
    the h@W_hh matmul, f32 accumulation and gate math) for a tight check.
    """
    H = w_hh.shape[0]
    embedded = jnp.take(emb_table, x_ids, axis=0)                # (B, T, E)
    w_hh_c = w_hh.astype(jnp.bfloat16) if recurrent_bf16 else w_hh

    def step(h, x_t):
        gi = x_t @ w_ih + b_ih
        h_in = h.astype(jnp.bfloat16) if recurrent_bf16 else h
        gh = jnp.dot(h_in, w_hh_c, preferred_element_type=jnp.float32) + b_hh
        i_r, i_z, i_n = gi[:, :H], gi[:, H:2 * H], gi[:, 2 * H:]
        h_r, h_z, h_n = gh[:, :H], gh[:, H:2 * H], gh[:, 2 * H:]
        r = jax.nn.sigmoid(i_r + h_r)
        z = jax.nn.sigmoid(i_z + h_z)
        n = jnp.tanh(i_n + r * h_n)
        return (1.0 - z) * n + z * h, None

    B = x_ids.shape[0]
    h0 = jnp.zeros((B, H), jnp.float32)
    h_T, _ = lax.scan(step, h0, jnp.transpose(embedded, (1, 0, 2)))
    return (h_T @ fc_w.reshape(H, 1) + fc_b.reshape(1, 1))[:, 0]


if __name__ == "__main__":
    vocab_size, embed_dim, hidden_dim = 50, 32, 32
    B, T = 8, 8  # keep B a multiple of 8 (sublane-aligned)

    key = jax.random.PRNGKey(0)
    k_emb, k_wih, k_whh, k_bih, k_bhh, k_fw, k_fb, k_x = jax.random.split(key, 8)

    s = 1.0 / jnp.sqrt(hidden_dim)
    emb_table = jax.random.normal(k_emb, (vocab_size, embed_dim), jnp.float32)
    emb_table = emb_table.at[0].set(0.0)  # padding_idx=0

    # PyTorch GRU params, stored transposed for row-vector matmuls:
    # w_ih: (E, 3H) == weight_ih_l0.T ; w_hh: (H, 3H) == weight_hh_l0.T
    w_ih = jax.random.uniform(k_wih, (embed_dim, 3 * hidden_dim), jnp.float32, -s, s)
    w_hh = jax.random.uniform(k_whh, (hidden_dim, 3 * hidden_dim), jnp.float32, -s, s)
    b_ih = jax.random.uniform(k_bih, (3 * hidden_dim,), jnp.float32, -s, s)
    b_hh = jax.random.uniform(k_bhh, (3 * hidden_dim,), jnp.float32, -s, s)
    fc_w = jax.random.uniform(k_fw, (hidden_dim, 1), jnp.float32, -s, s)
    fc_b = jax.random.uniform(k_fb, (1,), jnp.float32, -s, s)

    x_ids = jax.random.randint(k_x, (B, T), 0, vocab_size, dtype=jnp.int32)

    out = jax.block_until_ready(
        rnn_forward(x_ids, emb_table, w_ih, w_hh, b_ih, b_hh, fc_w, fc_b))
    assert out.shape == (B,)

    # Tight check against a reference with the same mixed precision as the kernel.
    ref_match = rnn_forward_ref(x_ids, emb_table, w_ih, w_hh, b_ih, b_hh,
                                fc_w, fc_b, recurrent_bf16=True)
    assert jnp.allclose(out, ref_match, atol=1e-3, rtol=1e-3), (out, ref_match)

    # Looser sanity check against the pure-f32 PyTorch-semantics reference
    # (difference comes only from bf16 operands on the recurrent matmul).
    ref_f32 = rnn_forward_ref(x_ids, emb_table, w_ih, w_hh, b_ih, b_hh,
                              fc_w, fc_b, recurrent_bf16=False)
    assert jnp.allclose(out, ref_f32, atol=5e-2, rtol=5e-2), (out, ref_f32)

    print("KERNEL_OK")
</pallas_src>

<mosaic_0001>
module attributes {stable_mosaic.version = 11 : i64} {
  func.func @gru_kernel(%arg0: memref<8x8x96xf32, #tpu.memory_space<vmem>>, %arg1: memref<32x96xbf16, #tpu.memory_space<vmem>>, %arg2: memref<1x96xf32, #tpu.memory_space<vmem>>, %arg3: memref<8x32xf32, #tpu.memory_space<vmem>>) attributes {dimension_semantics = [], scalar_prefetch = 0 : i64, scratch_operands = 0 : i64, tpu.core_type = #tpu.core_type<tc>} {
    %c0 = arith.constant 0 : index
    %c0_0 = arith.constant 0 : index
    %0 = vector.load %arg1[%c0, %c0_0] : memref<32x96xbf16, #tpu.memory_space<vmem>>, vector<32x96xbf16>
    %c0_1 = arith.constant 0 : index
    %c0_2 = arith.constant 0 : index
    %1 = vector.load %arg2[%c0_1, %c0_2] : memref<1x96xf32, #tpu.memory_space<vmem>>, vector<1x96xf32>
    %2 = vector.shape_cast %1 : vector<1x96xf32> to vector<1x96xf32>
    %3 = vector.broadcast %2 : vector<1x96xf32> to vector<8x96xf32>
    %cst = arith.constant 0.000000e+00 : f32
    %4 = vector.broadcast %cst : f32 to vector<8x32xf32>
    %c0_i32 = arith.constant 0 : i32
    %5 = arith.truncf %4 : vector<8x32xf32> to vector<8x32xbf16>
    %cst_3 = arith.constant dense<0.000000e+00> : vector<8x96xf32>
    %6 = tpu.matmul %5, %0, %cst_3 {dimension_numbers = #tpu.dot_dimension_numbers<[1], [0], [0], [1], [0, 0, 1, 1], [], []>} : vector<8x32xbf16>, vector<32x96xbf16>, vector<8x96xf32> -> vector<8x96xf32>
    %7 = arith.addf %6, %3 : vector<8x96xf32>
    %8 = arith.index_cast %c0_i32 : i32 to index
    %c0_4 = arith.constant 0 : index
    %c0_5 = arith.constant 0 : index
    %9 = vector.load %arg0[%8, %c0_4, %c0_5] : memref<8x8x96xf32, #tpu.memory_space<vmem>>, vector<1x8x96xf32>
    %10 = vector.shape_cast %9 : vector<1x8x96xf32> to vector<8x96xf32>
    %11 = vector.extract_strided_slice %10 {offsets = [0, 0], sizes = [8, 64], strides = [1, 1]} : vector<8x96xf32> to vector<8x64xf32>
    %12 = vector.extract_strided_slice %7 {offsets = [0, 0], sizes = [8, 64], strides = [1, 1]} : vector<8x96xf32> to vector<8x64xf32>
    %13 = arith.addf %11, %12 : vector<8x64xf32>
    %14 = arith.negf %13 : vector<8x64xf32>
    %15 = math.exp %14 : vector<8x64xf32>
    %cst_6 = arith.constant 1.000000e+00 : f32
    %16 = vector.broadcast %cst_6 : f32 to vector<8x64xf32>
    %17 = arith.addf %16, %15 : vector<8x64xf32>
    %18 = arith.divf %16, %17 : vector<8x64xf32>
    %19 = vector.extract_strided_slice %18 {offsets = [0, 0], sizes = [8, 32], strides = [1, 1]} : vector<8x64xf32> to vector<8x32xf32>
    %20 = vector.extract_strided_slice %18 {offsets = [0, 32], sizes = [8, 32], strides = [1, 1]} : vector<8x64xf32> to vector<8x32xf32>
    %21 = vector.extract_strided_slice %10 {offsets = [0, 64], sizes = [8, 32], strides = [1, 1]} : vector<8x96xf32> to vector<8x32xf32>
    %22 = vector.extract_strided_slice %7 {offsets = [0, 64], sizes = [8, 32], strides = [1, 1]} : vector<8x96xf32> to vector<8x32xf32>
    %23 = arith.mulf %19, %22 : vector<8x32xf32>
    %24 = arith.addf %21, %23 : vector<8x32xf32>
    %25 = math.tanh %24 : vector<8x32xf32>
    %cst_7 = arith.constant 1.000000e+00 : f32
    %26 = vector.broadcast %cst_7 : f32 to vector<8x32xf32>
    %27 = arith.subf %26, %20 : vector<8x32xf32>
    %28 = arith.mulf %27, %25 : vector<8x32xf32>
    %29 = arith.mulf %20, %4 : vector<8x32xf32>
    %30 = arith.addf %28, %29 : vector<8x32xf32>
    %c1_i32 = arith.constant 1 : i32
    %31 = arith.truncf %30 : vector<8x32xf32> to vector<8x32xbf16>
    %cst_8 = arith.constant dense<0.000000e+00> : vector<8x96xf32>
    %32 = tpu.matmul %31, %0, %cst_8 {dimension_numbers = #tpu.dot_dimension_numbers<[1], [0], [0], [1], [0, 0, 1, 1], [], []>} : vector<8x32xbf16>, vector<32x96xbf16>, vector<8x96xf32> -> vector<8x96xf32>
    %33 = arith.addf %32, %3 : vector<8x96xf32>
    %34 = arith.index_cast %c1_i32 : i32 to index
    %c0_9 = arith.constant 0 : index
    %c0_10 = arith.constant 0 : index
    %35 = vector.load %arg0[%34, %c0_9, %c0_10] : memref<8x8x96xf32, #tpu.memory_space<vmem>>, vector<1x8x96xf32>
    %36 = vector.shape_cast %35 : vector<1x8x96xf32> to vector<8x96xf32>
    %37 = vector.extract_strided_slice %36 {offsets = [0, 0], sizes = [8, 64], strides = [1, 1]} : vector<8x96xf32> to vector<8x64xf32>
    %38 = vector.extract_strided_slice %33 {offsets = [0, 0], sizes = [8, 64], strides = [1, 1]} : vector<8x96xf32> to vector<8x64xf32>
    %39 = arith.addf %37, %38 : vector<8x64xf32>
    %40 = arith.negf %39 : vector<8x64xf32>
    %41 = math.exp %40 : vector<8x64xf32>
    %cst_11 = arith.constant 1.000000e+00 : f32
    %42 = vector.broadcast %cst_11 : f32 to vector<8x64xf32>
    %43 = arith.addf %42, %41 : vector<8x64xf32>
    %44 = arith.divf %42, %43 : vector<8x64xf32>
    %45 = vector.extract_strided_slice %44 {offsets = [0, 0], sizes = [8, 32], strides = [1, 1]} : vector<8x64xf32> to vector<8x32xf32>
    %46 = vector.extract_strided_slice %44 {offsets = [0, 32], sizes = [8, 32], strides = [1, 1]} : vector<8x64xf32> to vector<8x32xf32>
    %47 = vector.extract_strided_slice %36 {offsets = [0, 64], sizes = [8, 32], strides = [1, 1]} : vector<8x96xf32> to vector<8x32xf32>
    %48 = vector.extract_strided_slice %33 {offsets = [0, 64], sizes = [8, 32], strides = [1, 1]} : vector<8x96xf32> to vector<8x32xf32>
    %49 = arith.mulf %45, %48 : vector<8x32xf32>
    %50 = arith.addf %47, %49 : vector<8x32xf32>
    %51 = math.tanh %50 : vector<8x32xf32>
    %cst_12 = arith.constant 1.000000e+00 : f32
    %52 = vector.broadcast %cst_12 : f32 to vector<8x32xf32>
    %53 = arith.subf %52, %46 : vector<8x32xf32>
    %54 = arith.mulf %53, %51 : vector<8x32xf32>
    %55 = arith.mulf %46, %30 : vector<8x32xf32>
    %56 = arith.addf %54, %55 : vector<8x32xf32>
    %c2_i32 = arith.constant 2 : i32
    %57 = arith.truncf %56 : vector<8x32xf32> to vector<8x32xbf16>
    %cst_13 = arith.constant dense<0.000000e+00> : vector<8x96xf32>
    %58 = tpu.matmul %57, %0, %cst_13 {dimension_numbers = #tpu.dot_dimension_numbers<[1], [0], [0], [1], [0, 0, 1, 1], [], []>} : vector<8x32xbf16>, vector<32x96xbf16>, vector<8x96xf32> -> vector<8x96xf32>
    %59 = arith.addf %58, %3 : vector<8x96xf32>
    %60 = arith.index_cast %c2_i32 : i32 to index
    %c0_14 = arith.constant 0 : index
    %c0_15 = arith.constant 0 : index
    %61 = vector.load %arg0[%60, %c0_14, %c0_15] : memref<8x8x96xf32, #tpu.memory_space<vmem>>, vector<1x8x96xf32>
    %62 = vector.shape_cast %61 : vector<1x8x96xf32> to vector<8x96xf32>
    %63 = vector.extract_strided_slice %62 {offsets = [0, 0], sizes = [8, 64], strides = [1, 1]} : vector<8x96xf32> to vector<8x64xf32>
    %64 = vector.extract_strided_slice %59 {offsets = [0, 0], sizes = [8, 64], strides = [1, 1]} : vector<8x96xf32> to vector<8x64xf32>
    %65 = arith.addf %63, %64 : vector<8x64xf32>
    %66 = arith.negf %65 : vector<8x64xf32>
    %67 = math.exp %66 : vector<8x64xf32>
    %cst_16 = arith.constant 1.000000e+00 : f32
    %68 = vector.broadcast %cst_16 : f32 to vector<8x64xf32>
    %69 = arith.addf %68, %67 : vector<8x64xf32>
    %70 = arith.divf %68, %69 : vector<8x64xf32>
    %71 = vector.extract_strided_slice %70 {offsets = [0, 0], sizes = [8, 32], strides = [1, 1]} : vector<8x64xf32> to vector<8x32xf32>
    %72 = vector.extract_strided_slice %70 {offsets = [0, 32], sizes = [8, 32], strides = [1, 1]} : vector<8x64xf32> to vector<8x32xf32>
    %73 = vector.extract_strided_slice %62 {offsets = [0, 64], sizes = [8, 32], strides = [1, 1]} : vector<8x96xf32> to vector<8x32xf32>
    %74 = vector.extract_strided_slice %59 {offsets = [0, 64], sizes = [8, 32], strides = [1, 1]} : vector<8x96xf32> to vector<8x32xf32>
    %75 = arith.mulf %71, %74 : vector<8x32xf32>
    %76 = arith.addf %73, %75 : vector<8x32xf32>
    %77 = math.tanh %76 : vector<8x32xf32>
    %cst_17 = arith.constant 1.000000e+00 : f32
    %78 = vector.broadcast %cst_17 : f32 to vector<8x32xf32>
    %79 = arith.subf %78, %72 : vector<8x32xf32>
    %80 = arith.mulf %79, %77 : vector<8x32xf32>
    %81 = arith.mulf %72, %56 : vector<8x32xf32>
    %82 = arith.addf %80, %81 : vector<8x32xf32>
    %c3_i32 = arith.constant 3 : i32
    %83 = arith.truncf %82 : vector<8x32xf32> to vector<8x32xbf16>
    %cst_18 = arith.constant dense<0.000000e+00> : vector<8x96xf32>
    %84 = tpu.matmul %83, %0, %cst_18 {dimension_numbers = #tpu.dot_dimension_numbers<[1], [0], [0], [1], [0, 0, 1, 1], [], []>} : vector<8x32xbf16>, vector<32x96xbf16>, vector<8x96xf32> -> vector<8x96xf32>
    %85 = arith.addf %84, %3 : vector<8x96xf32>
    %86 = arith.index_cast %c3_i32 : i32 to index
    %c0_19 = arith.constant 0 : index
    %c0_20 = arith.constant 0 : index
    %87 = vector.load %arg0[%86, %c0_19, %c0_20] : memref<8x8x96xf32, #tpu.memory_space<vmem>>, vector<1x8x96xf32>
    %88 = vector.shape_cast %87 : vector<1x8x96xf32> to vector<8x96xf32>
    %89 = vector.extract_strided_slice %88 {offsets = [0, 0], sizes = [8, 64], strides = [1, 1]} : vector<8x96xf32> to vector<8x64xf32>
    %90 = vector.extract_strided_slice %85 {offsets = [0, 0], sizes = [8, 64], strides = [1, 1]} : vector<8x96xf32> to vector<8x64xf32>
    %91 = arith.addf %89, %90 : vector<8x64xf32>
    %92 = arith.negf %91 : vector<8x64xf32>
    %93 = math.exp %92 : vector<8x64xf32>
    %cst_21 = arith.constant 1.000000e+00 : f32
    %94 = vector.broadcast %cst_21 : f32 to vector<8x64xf32>
    %95 = arith.addf %94, %93 : vector<8x64xf32>
    %96 = arith.divf %94, %95 : vector<8x64xf32>
    %97 = vector.extract_strided_slice %96 {offsets = [0, 0], sizes = [8, 32], strides = [1, 1]} : vector<8x64xf32> to vector<8x32xf32>
    %98 = vector.extract_strided_slice %96 {offsets = [0, 32], sizes = [8, 32], strides = [1, 1]} : vector<8x64xf32> to vector<8x32xf32>
    %99 = vector.extract_strided_slice %88 {offsets = [0, 64], sizes = [8, 32], strides = [1, 1]} : vector<8x96xf32> to vector<8x32xf32>
    %100 = vector.extract_strided_slice %85 {offsets = [0, 64], sizes = [8, 32], strides = [1, 1]} : vector<8x96xf32> to vector<8x32xf32>
    %101 = arith.mulf %97, %100 : vector<8x32xf32>
    %102 = arith.addf %99, %101 : vector<8x32xf32>
    %103 = math.tanh %102 : vector<8x32xf32>
    %cst_22 = arith.constant 1.000000e+00 : f32
    %104 = vector.broadcast %cst_22 : f32 to vector<8x32xf32>
    %105 = arith.subf %104, %98 : vector<8x32xf32>
    %106 = arith.mulf %105, %103 : vector<8x32xf32>
    %107 = arith.mulf %98, %82 : vector<8x32xf32>
    %108 = arith.addf %106, %107 : vector<8x32xf32>
    %c4_i32 = arith.constant 4 : i32
    %109 = arith.truncf %108 : vector<8x32xf32> to vector<8x32xbf16>
    %cst_23 = arith.constant dense<0.000000e+00> : vector<8x96xf32>
    %110 = tpu.matmul %109, %0, %cst_23 {dimension_numbers = #tpu.dot_dimension_numbers<[1], [0], [0], [1], [0, 0, 1, 1], [], []>} : vector<8x32xbf16>, vector<32x96xbf16>, vector<8x96xf32> -> vector<8x96xf32>
    %111 = arith.addf %110, %3 : vector<8x96xf32>
    %112 = arith.index_cast %c4_i32 : i32 to index
    %c0_24 = arith.constant 0 : index
    %c0_25 = arith.constant 0 : index
    %113 = vector.load %arg0[%112, %c0_24, %c0_25] : memref<8x8x96xf32, #tpu.memory_space<vmem>>, vector<1x8x96xf32>
    %114 = vector.shape_cast %113 : vector<1x8x96xf32> to vector<8x96xf32>
    %115 = vector.extract_strided_slice %114 {offsets = [0, 0], sizes = [8, 64], strides = [1, 1]} : vector<8x96xf32> to vector<8x64xf32>
    %116 = vector.extract_strided_slice %111 {offsets = [0, 0], sizes = [8, 64], strides = [1, 1]} : vector<8x96xf32> to vector<8x64xf32>
    %117 = arith.addf %115, %116 : vector<8x64xf32>
    %118 = arith.negf %117 : vector<8x64xf32>
    %119 = math.exp %118 : vector<8x64xf32>
    %cst_26 = arith.constant 1.000000e+00 : f32
    %120 = vector.broadcast %cst_26 : f32 to vector<8x64xf32>
    %121 = arith.addf %120, %119 : vector<8x64xf32>
    %122 = arith.divf %120, %121 : vector<8x64xf32>
    %123 = vector.extract_strided_slice %122 {offsets = [0, 0], sizes = [8, 32], strides = [1, 1]} : vector<8x64xf32> to vector<8x32xf32>
    %124 = vector.extract_strided_slice %122 {offsets = [0, 32], sizes = [8, 32], strides = [1, 1]} : vector<8x64xf32> to vector<8x32xf32>
    %125 = vector.extract_strided_slice %114 {offsets = [0, 64], sizes = [8, 32], strides = [1, 1]} : vector<8x96xf32> to vector<8x32xf32>
    %126 = vector.extract_strided_slice %111 {offsets = [0, 64], sizes = [8, 32], strides = [1, 1]} : vector<8x96xf32> to vector<8x32xf32>
    %127 = arith.mulf %123, %126 : vector<8x32xf32>
    %128 = arith.addf %125, %127 : vector<8x32xf32>
    %129 = math.tanh %128 : vector<8x32xf32>
    %cst_27 = arith.constant 1.000000e+00 : f32
    %130 = vector.broadcast %cst_27 : f32 to vector<8x32xf32>
    %131 = arith.subf %130, %124 : vector<8x32xf32>
    %132 = arith.mulf %131, %129 : vector<8x32xf32>
    %133 = arith.mulf %124, %108 : vector<8x32xf32>
    %134 = arith.addf %132, %133 : vector<8x32xf32>
    %c5_i32 = arith.constant 5 : i32
    %135 = arith.truncf %134 : vector<8x32xf32> to vector<8x32xbf16>
    %cst_28 = arith.constant dense<0.000000e+00> : vector<8x96xf32>
    %136 = tpu.matmul %135, %0, %cst_28 {dimension_numbers = #tpu.dot_dimension_numbers<[1], [0], [0], [1], [0, 0, 1, 1], [], []>} : vector<8x32xbf16>, vector<32x96xbf16>, vector<8x96xf32> -> vector<8x96xf32>
    %137 = arith.addf %136, %3 : vector<8x96xf32>
    %138 = arith.index_cast %c5_i32 : i32 to index
    %c0_29 = arith.constant 0 : index
    %c0_30 = arith.constant 0 : index
    %139 = vector.load %arg0[%138, %c0_29, %c0_30] : memref<8x8x96xf32, #tpu.memory_space<vmem>>, vector<1x8x96xf32>
    %140 = vector.shape_cast %139 : vector<1x8x96xf32> to vector<8x96xf32>
    %141 = vector.extract_strided_slice %140 {offsets = [0, 0], sizes = [8, 64], strides = [1, 1]} : vector<8x96xf32> to vector<8x64xf32>
    %142 = vector.extract_strided_slice %137 {offsets = [0, 0], sizes = [8, 64], strides = [1, 1]} : vector<8x96xf32> to vector<8x64xf32>
    %143 = arith.addf %141, %142 : vector<8x64xf32>
    %144 = arith.negf %143 : vector<8x64xf32>
    %145 = math.exp %144 : vector<8x64xf32>
    %cst_31 = arith.constant 1.000000e+00 : f32
    %146 = vector.broadcast %cst_31 : f32 to vector<8x64xf32>
    %147 = arith.addf %146, %145 : vector<8x64xf32>
    %148 = arith.divf %146, %147 : vector<8x64xf32>
    %149 = vector.extract_strided_slice %148 {offsets = [0, 0], sizes = [8, 32], strides = [1, 1]} : vector<8x64xf32> to vector<8x32xf32>
    %150 = vector.extract_strided_slice %148 {offsets = [0, 32], sizes = [8, 32], strides = [1, 1]} : vector<8x64xf32> to vector<8x32xf32>
    %151 = vector.extract_strided_slice %140 {offsets = [0, 64], sizes = [8, 32], strides = [1, 1]} : vector<8x96xf32> to vector<8x32xf32>
    %152 = vector.extract_strided_slice %137 {offsets = [0, 64], sizes = [8, 32], strides = [1, 1]} : vector<8x96xf32> to vector<8x32xf32>
    %153 = arith.mulf %149, %152 : vector<8x32xf32>
    %154 = arith.addf %151, %153 : vector<8x32xf32>
    %155 = math.tanh %154 : vector<8x32xf32>
    %cst_32 = arith.constant 1.000000e+00 : f32
    %156 = vector.broadcast %cst_32 : f32 to vector<8x32xf32>
    %157 = arith.subf %156, %150 : vector<8x32xf32>
    %158 = arith.mulf %157, %155 : vector<8x32xf32>
    %159 = arith.mulf %150, %134 : vector<8x32xf32>
    %160 = arith.addf %158, %159 : vector<8x32xf32>
    %c6_i32 = arith.constant 6 : i32
    %161 = arith.truncf %160 : vector<8x32xf32> to vector<8x32xbf16>
    %cst_33 = arith.constant dense<0.000000e+00> : vector<8x96xf32>
    %162 = tpu.matmul %161, %0, %cst_33 {dimension_numbers = #tpu.dot_dimension_numbers<[1], [0], [0], [1], [0, 0, 1, 1], [], []>} : vector<8x32xbf16>, vector<32x96xbf16>, vector<8x96xf32> -> vector<8x96xf32>
    %163 = arith.addf %162, %3 : vector<8x96xf32>
    %164 = arith.index_cast %c6_i32 : i32 to index
    %c0_34 = arith.constant 0 : index
    %c0_35 = arith.constant 0 : index
    %165 = vector.load %arg0[%164, %c0_34, %c0_35] : memref<8x8x96xf32, #tpu.memory_space<vmem>>, vector<1x8x96xf32>
    %166 = vector.shape_cast %165 : vector<1x8x96xf32> to vector<8x96xf32>
    %167 = vector.extract_strided_slice %166 {offsets = [0, 0], sizes = [8, 64], strides = [1, 1]} : vector<8x96xf32> to vector<8x64xf32>
    %168 = vector.extract_strided_slice %163 {offsets = [0, 0], sizes = [8, 64], strides = [1, 1]} : vector<8x96xf32> to vector<8x64xf32>
    %169 = arith.addf %167, %168 : vector<8x64xf32>
    %170 = arith.negf %169 : vector<8x64xf32>
    %171 = math.exp %170 : vector<8x64xf32>
    %cst_36 = arith.constant 1.000000e+00 : f32
    %172 = vector.broadcast %cst_36 : f32 to vector<8x64xf32>
    %173 = arith.addf %172, %171 : vector<8x64xf32>
    %174 = arith.divf %172, %173 : vector<8x64xf32>
    %175 = vector.extract_strided_slice %174 {offsets = [0, 0], sizes = [8, 32], strides = [1, 1]} : vector<8x64xf32> to vector<8x32xf32>
    %176 = vector.extract_strided_slice %174 {offsets = [0, 32], sizes = [8, 32], strides = [1, 1]} : vector<8x64xf32> to vector<8x32xf32>
    %177 = vector.extract_strided_slice %166 {offsets = [0, 64], sizes = [8, 32], strides = [1, 1]} : vector<8x96xf32> to vector<8x32xf32>
    %178 = vector.extract_strided_slice %163 {offsets = [0, 64], sizes = [8, 32], strides = [1, 1]} : vector<8x96xf32> to vector<8x32xf32>
    %179 = arith.mulf %175, %178 : vector<8x32xf32>
    %180 = arith.addf %177, %179 : vector<8x32xf32>
    %181 = math.tanh %180 : vector<8x32xf32>
    %cst_37 = arith.constant 1.000000e+00 : f32
    %182 = vector.broadcast %cst_37 : f32 to vector<8x32xf32>
    %183 = arith.subf %182, %176 : vector<8x32xf32>
    %184 = arith.mulf %183, %181 : vector<8x32xf32>
    %185 = arith.mulf %176, %160 : vector<8x32xf32>
    %186 = arith.addf %184, %185 : vector<8x32xf32>
    %c7_i32 = arith.constant 7 : i32
    %187 = arith.truncf %186 : vector<8x32xf32> to vector<8x32xbf16>
    %cst_38 = arith.constant dense<0.000000e+00> : vector<8x96xf32>
    %188 = tpu.matmul %187, %0, %cst_38 {dimension_numbers = #tpu.dot_dimension_numbers<[1], [0], [0], [1], [0, 0, 1, 1], [], []>} : vector<8x32xbf16>, vector<32x96xbf16>, vector<8x96xf32> -> vector<8x96xf32>
    %189 = arith.addf %188, %3 : vector<8x96xf32>
    %190 = arith.index_cast %c7_i32 : i32 to index
    %c0_39 = arith.constant 0 : index
    %c0_40 = arith.constant 0 : index
    %191 = vector.load %arg0[%190, %c0_39, %c0_40] : memref<8x8x96xf32, #tpu.memory_space<vmem>>, vector<1x8x96xf32>
    %192 = vector.shape_cast %191 : vector<1x8x96xf32> to vector<8x96xf32>
    %193 = vector.extract_strided_slice %192 {offsets = [0, 0], sizes = [8, 64], strides = [1, 1]} : vector<8x96xf32> to vector<8x64xf32>
    %194 = vector.extract_strided_slice %189 {offsets = [0, 0], sizes = [8, 64], strides = [1, 1]} : vector<8x96xf32> to vector<8x64xf32>
    %195 = arith.addf %193, %194 : vector<8x64xf32>
    %196 = arith.negf %195 : vector<8x64xf32>
    %197 = math.exp %196 : vector<8x64xf32>
    %cst_41 = arith.constant 1.000000e+00 : f32
    %198 = vector.broadcast %cst_41 : f32 to vector<8x64xf32>
    %199 = arith.addf %198, %197 : vector<8x64xf32>
    %200 = arith.divf %198, %199 : vector<8x64xf32>
    %201 = vector.extract_strided_slice %200 {offsets = [0, 0], sizes = [8, 32], strides = [1, 1]} : vector<8x64xf32> to vector<8x32xf32>
    %202 = vector.extract_strided_slice %200 {offsets = [0, 32], sizes = [8, 32], strides = [1, 1]} : vector<8x64xf32> to vector<8x32xf32>
    %203 = vector.extract_strided_slice %192 {offsets = [0, 64], sizes = [8, 32], strides = [1, 1]} : vector<8x96xf32> to vector<8x32xf32>
    %204 = vector.extract_strided_slice %189 {offsets = [0, 64], sizes = [8, 32], strides = [1, 1]} : vector<8x96xf32> to vector<8x32xf32>
    %205 = arith.mulf %201, %204 : vector<8x32xf32>
    %206 = arith.addf %203, %205 : vector<8x32xf32>
    %207 = math.tanh %206 : vector<8x32xf32>
    %cst_42 = arith.constant 1.000000e+00 : f32
    %208 = vector.broadcast %cst_42 : f32 to vector<8x32xf32>
    %209 = arith.subf %208, %202 : vector<8x32xf32>
    %210 = arith.mulf %209, %207 : vector<8x32xf32>
    %211 = arith.mulf %202, %186 : vector<8x32xf32>
    %212 = arith.addf %210, %211 : vector<8x32xf32>
    %c8_i32 = arith.constant 8 : i32
    %c0_43 = arith.constant 0 : index
    %c0_44 = arith.constant 0 : index
    %213 = vector.load %arg3[%c0_43, %c0_44] : memref<8x32xf32, #tpu.memory_space<vmem>>, vector<8x32xf32>
    tpu.vector_store %arg3[%c0_43, %c0_44], %212 {strides = array<i32>} : memref<8x32xf32, #tpu.memory_space<vmem>>, vector<8x32xf32>,
    return
  }
}

</mosaic_0001>

<llo_original>
// kernel: tpu_custom_call.1
$region0: #{tpu_custom_call.1}
  #allocation0 [shape = 'u32[]', space=smem, size = 0x4, offset = 0x4, fixed_abs, tag = 'smem constant byte address 0x4 - core index']
  #allocation1 [shape = 'u32[144,128]{1,0:T(1,128)}', space=vmem, size = 0x12000, scoped, tag = 'internal scratch']
  %s0 = inlined_call_operand.hbm [shape: f32[8,8,96], index: 0, kind: input, shape index: {}]
  %s1 = inlined_call_operand.hbm [shape: bf16[32,96], index: 1, kind: input, shape index: {}]
  %s2 = inlined_call_operand.vmem [shape: f32[1,96], index: 2, kind: input, shape index: {}]
  %s3 = inlined_call_operand.hbm [shape: f32[8,32], index: 3, kind: output, shape index: {}]
  %s4 = sld [smem:[#allocation0]]
  $region30: #{tpu_custom_call.1} parent=0
    _
  %s6 = ssub.s32 1, %s4
  %s7 = scalar_select 0, %s6, %s4
  $region1: #{tpu_custom_call.1} parent=0
    #allocation2 [shape = 'u8[32768]{0}', space=vmem, size = 0x8000, scoped, tag = 'input window, operand 0, single buffered']
    #allocation3 [shape = 's32[1]{0}', space=sflag, size = 0x4, scoped, tag = 'scoped memory for tpu_custom_call.1']
    #allocation4 [shape = 's32[1]{0}', space=sflag, size = 0x4, scoped, tag = 'scoped memory for tpu_custom_call.1']
    #allocation5 [shape = 'u8[8192]{0}', space=vmem, size = 0x2000, scoped, tag = 'input window, operand 1, single buffered']
    #allocation6 [shape = 's32[1]{0}', space=sflag, size = 0x4, scoped, tag = 'scoped memory for tpu_custom_call.1']
    #allocation7 [shape = 'u8[4096]{0}', space=vmem, size = 0x1000, scoped, tag = 'output window, operand 0, single buffered']
    %8 = vsyncpa [#allocation3], 0
    %9 = vsyncpa [#allocation6], 0
    %10 = vsyncpa [#allocation4], 0
    // Predicated region
    $region2: #{tpu_custom_call.1} parent=1 // pred_check
      _
    $region3: #{tpu_custom_call.1} parent=1 // pred_check_branch
      %12 = sbr.rel (0) target = $region5
    $region4: #{tpu_custom_call.1} parent=1 // pred_region
      %s14 = ssub.s32 1024, 1024
      %15 = vsyncadd [#allocation3], %s14
      %s16 = sshll.u32 [#allocation2], 4
      %s17 = int_to_ptr.vmem [resolvable:$true] %s16
      %22 = dma.hbm_to_vmem [thread:$0]  %s0, 1024, %s17, [#allocation3], 128, 128, 8
    $region5: #{tpu_custom_call.1} parent=1 // pred_fallthru
      _
    // Predicated region
    $region6: #{tpu_custom_call.1} parent=1 // pred_check
      _
    $region7: #{tpu_custom_call.1} parent=1 // pred_check_branch
      %24 = sbr.rel (0) target = $region9
    $region8: #{tpu_custom_call.1} parent=1 // pred_region
      %s26 = ssub.s32 256, 256
      %27 = vsyncadd [#allocation6], %s26
      %s28 = sshll.u32 [#allocation5], 4
      %s29 = int_to_ptr.vmem [resolvable:$true] %s28
      %34 = dma.hbm_to_vmem [thread:$0]  %s1, 256, %s29, [#allocation6], 64, 64, 4
    $region9: #{tpu_custom_call.1} parent=1 // pred_fallthru
      _
    // Predicated region
    $region10: #{tpu_custom_call.1} parent=1 // pred_check
      _
    $region11: #{tpu_custom_call.1} parent=1 // pred_check_branch
      %36 = sbr.rel (0) target = $region13
    $region12: #{tpu_custom_call.1} parent=1 // pred_region
      _
    $region13: #{tpu_custom_call.1} parent=1 // pred_fallthru
      _
    // Predicated region
    $region14: #{tpu_custom_call.1} parent=1 // pred_check
      _
    $region15: #{tpu_custom_call.1} parent=1 // pred_check_branch
      %38 = sbr.rel (0) target = $region17
    $region16: #{tpu_custom_call.1} parent=1 // pred_region
      %39 = dma.done [#allocation3], 1024
    $region17: #{tpu_custom_call.1} parent=1 // pred_fallthru
      _
    // Predicated region
    $region18: #{tpu_custom_call.1} parent=1 // pred_check
      _
    $region19: #{tpu_custom_call.1} parent=1 // pred_check_branch
      %41 = sbr.rel (0) target = $region21
    $region20: #{tpu_custom_call.1} parent=1 // pred_region
      %42 = dma.done [#allocation6], 256
    $region21: #{tpu_custom_call.1} parent=1 // pred_fallthru
      _
    %v44 = vld [vmem:[#allocation5] sm:$0xf]
    %v45 = vld [vmem:[#allocation5 + $0x4] sm:$0xf]
    %v46 = vld [vmem:[#allocation5 + $0x8] sm:$0xf]
    %v47 = vld [vmem:[#allocation5 + $0xc] sm:$0xf]
    %v48 = vld [vmem:[%s2] sm:$0x1]
    %v50 = vlaneseq
    %v51 = vshrl.u32 %v50, 7
    %v52 = vsub.s32 0, %v51
    %v53 = vrot.slane %v48, %v52
    %v59 = vunpack.c.l.b16 %v44
    %v60 = vunpack.c.l.b16 %v45
    %v61 = vunpack.c.l.b16 %v46
    %v62 = vunpack.c.l.b16 %v47
    %v63 = vpack.c.b16 %v60, %v59
    %v64 = vpack.c.b16 %v62, %v61
    %vm67 = vcmask 261120
    %v69 = vsel %vm67, 0, 0
    %71 = vmatprep.subr.bf16.mxu0 0
    %72 = vmatpush1.bf16.msra.mxu0 %v63
    %73 = vmatprep.subr.bf16.mxu0 0
    %74 = vmatpush1.bf16.msra.mxu0 %v64
    %75 = vmatprep.subr.bf16.mxu0 0
    %76 = vmatpush1.bf16.msra.mxu0 0
    %77 = vmatprep.subr.bf16.mxu0 0
    %78 = vmatpush1.bf16.msra.mxu0 0
    %79 = vmatprep.subr.bf16.mxu0 0
    %80 = vmatpush1.bf16.msra.mxu0 0
    %81 = vmatprep.subr.bf16.mxu0 0
    %82 = vmatpush1.bf16.msra.mxu0 0
    %83 = vmatprep.subr.bf16.mxu0 0
    %84 = vmatpush1.bf16.msra.mxu0 0
    %85 = vmatprep.subr.bf16.mxu0 0
    %86 = vmatpush1.bf16.msra.mxu0 0
    %87 = vmatprep.subr.bf16.mxu0 0
    %88 = vmatpush1.bf16.msra.mxu0 0
    %89 = vmatprep.subr.bf16.mxu0 0
    %90 = vmatpush1.bf16.msra.mxu0 0
    %91 = vmatprep.subr.bf16.mxu0 0
    %92 = vmatpush1.bf16.msra.mxu0 0
    %93 = vmatprep.subr.bf16.mxu0 0
    %94 = vmatpush1.bf16.msra.mxu0 0
    %95 = vmatprep.subr.bf16.mxu0 0
    %96 = vmatpush1.bf16.msra.mxu0 0
    %97 = vmatprep.subr.bf16.mxu0 0
    %98 = vmatpush1.bf16.msra.mxu0 0
    %99 = vmatprep.subr.bf16.mxu0 0
    %100 = vmatpush1.bf16.msra.mxu0 0
    %101 = vmatprep.subr.bf16.mxu0 0
    %102 = vmatpush1.bf16.msra.mxu0 0
    %103 = vmatprep.mubr.bf16.mxu0 0
    %104 = vmatmul.mubr.bf16.gmra.mrb[0].mxu0 %v69
    %v105 = vpop.f32.mrb[0].mxu0
    %v106 = vadd.f32 %v53, %v105
    %v107 = vpop.f32.mrb[0].mxu0
    %v108 = vpop.f32.mrb[0].mxu0
    %v109 = vpop.f32.mrb[0].mxu0
    %110 = vdwg.mxu0
    %v111 = vld [vmem:[#allocation2] sm:$0xff]
    %v112 = vadd.f32 %v111, %v106
    %v113 = vxor.u32 %v112, 2147483648
    %v114 = vmul.f32 %v113, 1.442695
    %v115 = vpow.pop %v114
    %v116 = vadd.f32 %v115, 1.0
    %v117 = vrcp.pop %v116
    %v118 = vmul.f32 1.0, %v117
    %120 = vrot.lane.b32.xlu0 %v106, 64
    %v121 = vpop.permute.xlu0 %120
    %v123 = vmul.f32 %v118, %v121
    %125 = vrot.lane.b32.xlu0 %v123, 64
    %v126 = vpop.permute.xlu0 %125
    %v128 = vadd.f32 %v111, %v126
    %v129 = vtanh.pop %v128
    %v130 = vsub.f32 1.0, %v118
    %132 = vrot.lane.b32.xlu0 %v129, 96
    %v133 = vpop.permute.xlu0 %132
    %v135 = vmul.f32 %v130, %v133
    %v136 = vmul.f32 %v118, 0.0
    %v137 = vadd.f32 %v135, %v136
    %v138 = vpack.c.bf16 %v137, %v137
    %140 = vrot.lane.b32.xlu0 %v138, 96
    %v141 = vpop.permute.xlu0 %140
    %v143 = vsel %vm67, %v141, 0
    %145 = vmatprep.subr.bf16.mxu0 0
    %146 = vmatpush1.bf16.msra.mxu0 %v63
    %147 = vmatprep.subr.bf16.mxu0 0
    %148 = vmatpush1.bf16.msra.mxu0 %v64
    %149 = vmatprep.subr.bf16.mxu0 0
    %150 = vmatpush1.bf16.msra.mxu0 0
    %151 = vmatprep.subr.bf16.mxu0 0
    %152 = vmatpush1.bf16.msra.mxu0 0
    %153 = vmatprep.subr.bf16.mxu0 0
    %154 = vmatpush1.bf16.msra.mxu0 0
    %155 = vmatprep.subr.bf16.mxu0 0
    %156 = vmatpush1.bf16.msra.mxu0 0
    %157 = vmatprep.subr.bf16.mxu0 0
    %158 = vmatpush1.bf16.msra.mxu0 0
    %159 = vmatprep.subr.bf16.mxu0 0
    %160 = vmatpush1.bf16.msra.mxu0 0
    %161 = vmatprep.subr.bf16.mxu0 0
    %162 = vmatpush1.bf16.msra.mxu0 0
    %163 = vmatprep.subr.bf16.mxu0 0
    %164 = vmatpush1.bf16.msra.mxu0 0
    %165 = vmatprep.subr.bf16.mxu0 0
    %166 = vmatpush1.bf16.msra.mxu0 0
    %167 = vmatprep.subr.bf16.mxu0 0
    %168 = vmatpush1.bf16.msra.mxu0 0
    %169 = vmatprep.subr.bf16.mxu0 0
    %170 = vmatpush1.bf16.msra.mxu0 0
    %171 = vmatprep.subr.bf16.mxu0 0
    %172 = vmatpush1.bf16.msra.mxu0 0
    %173 = vmatprep.subr.bf16.mxu0 0
    %174 = vmatpush1.bf16.msra.mxu0 0
    %175 = vmatprep.subr.bf16.mxu0 0
    %176 = vmatpush1.bf16.msra.mxu0 0
    %177 = vmatprep.mubr.bf16.mxu0 0
    %178 = vmatmul.mubr.bf16.gmra.mrb[0].mxu0 %v143
    %v179 = vpop.f32.mrb[0].mxu0
    %v180 = vadd.f32 %v53, %v179
    %v181 = vpop.f32.mrb[0].mxu0
    %v182 = vpop.f32.mrb[0].mxu0
    %v183 = vpop.f32.mrb[0].mxu0
    %184 = vdwg.mxu0
    %s185 = scalar_lea.vmem [#allocation2], 8
    %v186 = vld [vmem:[%s185] sm:$0xff]
    %v187 = vadd.f32 %v186, %v180
    %v188 = vxor.u32 %v187, 2147483648
    %v189 = vmul.f32 %v188, 1.442695
    %v190 = vpow.pop %v189
    %v191 = vadd.f32 %v190, 1.0
    %v192 = vrcp.pop %v191
    %v193 = vmul.f32 1.0, %v192
    %195 = vrot.lane.b32.xlu0 %v180, 64
    %v196 = vpop.permute.xlu0 %195
    %v198 = vmul.f32 %v193, %v196
    %200 = vrot.lane.b32.xlu0 %v198, 64
    %v201 = vpop.permute.xlu0 %200
    %v203 = vadd.f32 %v186, %v201
    %v204 = vtanh.pop %v203
    %v205 = vsub.f32 1.0, %v193
    %207 = vrot.lane.b32.xlu0 %v204, 96
    %v208 = vpop.permute.xlu0 %207
    %v210 = vmul.f32 %v205, %v208
    %v211 = vmul.f32 %v193, %v137
    %v212 = vadd.f32 %v210, %v211
    %v213 = vpack.c.bf16 %v212, %v212
    %215 = vrot.lane.b32.xlu0 %v213, 96
    %v216 = vpop.permute.xlu0 %215
    %v218 = vsel %vm67, %v216, 0
    %220 = vmatprep.subr.bf16.mxu0 0
    %221 = vmatpush1.bf16.msra.mxu0 %v63
    %222 = vmatprep.subr.bf16.mxu0 0
    %223 = vmatpush1.bf16.msra.mxu0 %v64
    %224 = vmatprep.subr.bf16.mxu0 0
    %225 = vmatpush1.bf16.msra.mxu0 0
    %226 = vmatprep.subr.bf16.mxu0 0
    %227 = vmatpush1.bf16.msra.mxu0 0
    %228 = vmatprep.subr.bf16.mxu0 0
    %229 = vmatpush1.bf16.msra.mxu0 0
    %230 = vmatprep.subr.bf16.mxu0 0
    %231 = vmatpush1.bf16.msra.mxu0 0
    %232 = vmatprep.subr.bf16.mxu0 0
    %233 = vmatpush1.bf16.msra.mxu0 0
    %234 = vmatprep.subr.bf16.mxu0 0
    %235 = vmatpush1.bf16.msra.mxu0 0
    %236 = vmatprep.subr.bf16.mxu0 0
    %237 = vmatpush1.bf16.msra.mxu0 0
    %238 = vmatprep.subr.bf16.mxu0 0
    %239 = vmatpush1.bf16.msra.mxu0 0
    %240 = vmatprep.subr.bf16.mxu0 0
    %241 = vmatpush1.bf16.msra.mxu0 0
    %242 = vmatprep.subr.bf16.mxu0 0
    %243 = vmatpush1.bf16.msra.mxu0 0
    %244 = vmatprep.subr.bf16.mxu0 0
    %245 = vmatpush1.bf16.msra.mxu0 0
    %246 = vmatprep.subr.bf16.mxu0 0
    %247 = vmatpush1.bf16.msra.mxu0 0
    %248 = vmatprep.subr.bf16.mxu0 0
    %249 = vmatpush1.bf16.msra.mxu0 0
    %250 = vmatprep.subr.bf16.mxu0 0
    %251 = vmatpush1.bf16.msra.mxu0 0
    %252 = vmatprep.mubr.bf16.mxu0 0
    %253 = vmatmul.mubr.bf16.gmra.mrb[0].mxu0 %v218
    %v254 = vpop.f32.mrb[0].mxu0
    %v255 = vadd.f32 %v53, %v254
    %v256 = vpop.f32.mrb[0].mxu0
    %v257 = vpop.f32.mrb[0].mxu0
    %v258 = vpop.f32.mrb[0].mxu0
    %259 = vdwg.mxu0
    %s260 = scalar_lea.vmem [#allocation2], 16
    %v261 = vld [vmem:[%s260] sm:$0xff]
    %v262 = vadd.f32 %v261, %v255
    %v263 = vxor.u32 %v262, 2147483648
    %v264 = vmul.f32 %v263, 1.442695
    %v265 = vpow.pop %v264
    %v266 = vadd.f32 %v265, 1.0
    %v267 = vrcp.pop %v266
    %v268 = vmul.f32 1.0, %v267
    %270 = vrot.lane.b32.xlu0 %v255, 64
    %v271 = vpop.permute.xlu0 %270
    %v273 = vmul.f32 %v268, %v271
    %275 = vrot.lane.b32.xlu0 %v273, 64
    %v276 = vpop.permute.xlu0 %275
    %v278 = vadd.f32 %v261, %v276
    %v279 = vtanh.pop %v278
    %v280 = vsub.f32 1.0, %v268
    %282 = vrot.lane.b32.xlu0 %v279, 96
    %v283 = vpop.permute.xlu0 %282
    %v285 = vmul.f32 %v280, %v283
    %v286 = vmul.f32 %v268, %v212
    %v287 = vadd.f32 %v285, %v286
    %v288 = vpack.c.bf16 %v287, %v287
    %290 = vrot.lane.b32.xlu0 %v288, 96
    %v291 = vpop.permute.xlu0 %290
    %v293 = vsel %vm67, %v291, 0
    %295 = vmatprep.subr.bf16.mxu0 0
    %296 = vmatpush1.bf16.msra.mxu0 %v63
    %297 = vmatprep.subr.bf16.mxu0 0
    %298 = vmatpush1.bf16.msra.mxu0 %v64
    %299 = vmatprep.subr.bf16.mxu0 0
    %300 = vmatpush1.bf16.msra.mxu0 0
    %301 = vmatprep.subr.bf16.mxu0 0
    %302 = vmatpush1.bf16.msra.mxu0 0
    %303 = vmatprep.subr.bf16.mxu0 0
    %304 = vmatpush1.bf16.msra.mxu0 0
    %305 = vmatprep.subr.bf16.mxu0 0
    %306 = vmatpush1.bf16.msra.mxu0 0
    %307 = vmatprep.subr.bf16.mxu0 0
    %308 = vmatpush1.bf16.msra.mxu0 0
    %309 = vmatprep.subr.bf16.mxu0 0
    %310 = vmatpush1.bf16.msra.mxu0 0
    %311 = vmatprep.subr.bf16.mxu0 0
    %312 = vmatpush1.bf16.msra.mxu0 0
    %313 = vmatprep.subr.bf16.mxu0 0
    %314 = vmatpush1.bf16.msra.mxu0 0
    %315 = vmatprep.subr.bf16.mxu0 0
    %316 = vmatpush1.bf16.msra.mxu0 0
    %317 = vmatprep.subr.bf16.mxu0 0
    %318 = vmatpush1.bf16.msra.mxu0 0
    %319 = vmatprep.subr.bf16.mxu0 0
    %320 = vmatpush1.bf16.msra.mxu0 0
    %321 = vmatprep.subr.bf16.mxu0 0
    %322 = vmatpush1.bf16.msra.mxu0 0
    %323 = vmatprep.subr.bf16.mxu0 0
    %324 = vmatpush1.bf16.msra.mxu0 0
    %325 = vmatprep.subr.bf16.mxu0 0
    %326 = vmatpush1.bf16.msra.mxu0 0
    %327 = vmatprep.mubr.bf16.mxu0 0
    %328 = vmatmul.mubr.bf16.gmra.mrb[0].mxu0 %v293
    %v329 = vpop.f32.mrb[0].mxu0
    %v330 = vadd.f32 %v53, %v329
    %v331 = vpop.f32.mrb[0].mxu0
    %v332 = vpop.f32.mrb[0].mxu0
    %v333 = vpop.f32.mrb[0].mxu0
    %334 = vdwg.mxu0
    %s335 = scalar_lea.vmem [#allocation2], 24
    %v336 = vld [vmem:[%s335] sm:$0xff]
    %v337 = vadd.f32 %v336, %v330
    %v338 = vxor.u32 %v337, 2147483648
    %v339 = vmul.f32 %v338, 1.442695
    %v340 = vpow.pop %v339
    %v341 = vadd.f32 %v340, 1.0
    %v342 = vrcp.pop %v341
    %v343 = vmul.f32 1.0, %v342
    %345 = vrot.lane.b32.xlu0 %v330, 64
    %v346 = vpop.permute.xlu0 %345
    %v348 = vmul.f32 %v343, %v346
    %350 = vrot.lane.b32.xlu0 %v348, 64
    %v351 = vpop.permute.xlu0 %350
    %v353 = vadd.f32 %v336, %v351
    %v354 = vtanh.pop %v353
    %v355 = vsub.f32 1.0, %v343
    %357 = vrot.lane.b32.xlu0 %v354, 96
    %v358 = vpop.permute.xlu0 %357
    %v360 = vmul.f32 %v355, %v358
    %v361 = vmul.f32 %v343, %v287
    %v362 = vadd.f32 %v360, %v361
    %v363 = vpack.c.bf16 %v362, %v362
    %365 = vrot.lane.b32.xlu0 %v363, 96
    %v366 = vpop.permute.xlu0 %365
    %v368 = vsel %vm67, %v366, 0
    %370 = vmatprep.subr.bf16.mxu0 0
    %371 = vmatpush1.bf16.msra.mxu0 %v63
    %372 = vmatprep.subr.bf16.mxu0 0
    %373 = vmatpush1.bf16.msra.mxu0 %v64
    %374 = vmatprep.subr.bf16.mxu0 0
    %375 = vmatpush1.bf16.msra.mxu0 0
    %376 = vmatprep.subr.bf16.mxu0 0
    %377 = vmatpush1.bf16.msra.mxu0 0
    %378 = vmatprep.subr.bf16.mxu0 0
    %379 = vmatpush1.bf16.msra.mxu0 0
    %380 = vmatprep.subr.bf16.mxu0 0
    %381 = vmatpush1.bf16.msra.mxu0 0
    %382 = vmatprep.subr.bf16.mxu0 0
    %383 = vmatpush1.bf16.msra.mxu0 0
    %384 = vmatprep.subr.bf16.mxu0 0
    %385 = vmatpush1.bf16.msra.mxu0 0
    %386 = vmatprep.subr.bf16.mxu0 0
    %387 = vmatpush1.bf16.msra.mxu0 0
    %388 = vmatprep.subr.bf16.mxu0 0
    %389 = vmatpush1.bf16.msra.mxu0 0
    %390 = vmatprep.subr.bf16.mxu0 0
    %391 = vmatpush1.bf16.msra.mxu0 0
    %392 = vmatprep.subr.bf16.mxu0 0
    %393 = vmatpush1.bf16.msra.mxu0 0
    %394 = vmatprep.subr.bf16.mxu0 0
    %395 = vmatpush1.bf16.msra.mxu0 0
    %396 = vmatprep.subr.bf16.mxu0 0
    %397 = vmatpush1.bf16.msra.mxu0 0
    %398 = vmatprep.subr.bf16.mxu0 0
    %399 = vmatpush1.bf16.msra.mxu0 0
    %400 = vmatprep.subr.bf16.mxu0 0
    %401 = vmatpush1.bf16.msra.mxu0 0
    %402 = vmatprep.mubr.bf16.mxu0 0
    %403 = vmatmul.mubr.bf16.gmra.mrb[0].mxu0 %v368
    %v404 = vpop.f32.mrb[0].mxu0
    %v405 = vadd.f32 %v53, %v404
    %v406 = vpop.f32.mrb[0].mxu0
    %v407 = vpop.f32.mrb[0].mxu0
    %v408 = vpop.f32.mrb[0].mxu0
    %409 = vdwg.mxu0
    %s410 = scalar_lea.vmem [#allocation2], 32
    %v411 = vld [vmem:[%s410] sm:$0xff]
    %v412 = vadd.f32 %v411, %v405
    %v413 = vxor.u32 %v412, 2147483648
    %v414 = vmul.f32 %v413, 1.442695
    %v415 = vpow.pop %v414
    %v416 = vadd.f32 %v415, 1.0
    %v417 = vrcp.pop %v416
    %v418 = vmul.f32 1.0, %v417
    %420 = vrot.lane.b32.xlu0 %v405, 64
    %v421 = vpop.permute.xlu0 %420
    %v423 = vmul.f32 %v418, %v421
    %425 = vrot.lane.b32.xlu0 %v423, 64
    %v426 = vpop.permute.xlu0 %425
    %v428 = vadd.f32 %v411, %v426
    %v429 = vtanh.pop %v428
    %v430 = vsub.f32 1.0, %v418
    %432 = vrot.lane.b32.xlu0 %v429, 96
    %v433 = vpop.permute.xlu0 %432
    %v435 = vmul.f32 %v430, %v433
    %v436 = vmul.f32 %v418, %v362
    %v437 = vadd.f32 %v435, %v436
    %v438 = vpack.c.bf16 %v437, %v437
    %440 = vrot.lane.b32.xlu0 %v438, 96
    %v441 = vpop.permute.xlu0 %440
    %v443 = vsel %vm67, %v441, 0
    %445 = vmatprep.subr.bf16.mxu0 0
    %446 = vmatpush1.bf16.msra.mxu0 %v63
    %447 = vmatprep.subr.bf16.mxu0 0
    %448 = vmatpush1.bf16.msra.mxu0 %v64
    %449 = vmatprep.subr.bf16.mxu0 0
    %450 = vmatpush1.bf16.msra.mxu0 0
    %451 = vmatprep.subr.bf16.mxu0 0
    %452 = vmatpush1.bf16.msra.mxu0 0
    %453 = vmatprep.subr.bf16.mxu0 0
    %454 = vmatpush1.bf16.msra.mxu0 0
    %455 = vmatprep.subr.bf16.mxu0 0
    %456 = vmatpush1.bf16.msra.mxu0 0
    %457 = vmatprep.subr.bf16.mxu0 0
    %458 = vmatpush1.bf16.msra.mxu0 0
    %459 = vmatprep.subr.bf16.mxu0 0
    %460 = vmatpush1.bf16.msra.mxu0 0
    %461 = vmatprep.subr.bf16.mxu0 0
    %462 = vmatpush1.bf16.msra.mxu0 0
    %463 = vmatprep.subr.bf16.mxu0 0
    %464 = vmatpush1.bf16.msra.mxu0 0
    %465 = vmatprep.subr.bf16.mxu0 0
    %466 = vmatpush1.bf16.msra.mxu0 0
    %467 = vmatprep.subr.bf16.mxu0 0
    %468 = vmatpush1.bf16.msra.mxu0 0
    %469 = vmatprep.subr.bf16.mxu0 0
    %470 = vmatpush1.bf16.msra.mxu0 0
    %471 = vmatprep.subr.bf16.mxu0 0
    %472 = vmatpush1.bf16.msra.mxu0 0
    %473 = vmatprep.subr.bf16.mxu0 0
    %474 = vmatpush1.bf16.msra.mxu0 0
    %475 = vmatprep.subr.bf16.mxu0 0
    %476 = vmatpush1.bf16.msra.mxu0 0
    %477 = vmatprep.mubr.bf16.mxu0 0
    %478 = vmatmul.mubr.bf16.gmra.mrb[0].mxu0 %v443
    %v479 = vpop.f32.mrb[0].mxu0
    %v480 = vadd.f32 %v53, %v479
    %v481 = vpop.f32.mrb[0].mxu0
    %v482 = vpop.f32.mrb[0].mxu0
    %v483 = vpop.f32.mrb[0].mxu0
    %484 = vdwg.mxu0
    %s485 = scalar_lea.vmem [#allocation2], 40
    %v486 = vld [vmem:[%s485] sm:$0xff]
    %v487 = vadd.f32 %v486, %v480
    %v488 = vxor.u32 %v487, 2147483648
    %v489 = vmul.f32 %v488, 1.442695
    %v490 = vpow.pop %v489
    %v491 = vadd.f32 %v490, 1.0
    %v492 = vrcp.pop %v491
    %v493 = vmul.f32 1.0, %v492
    %495 = vrot.lane.b32.xlu0 %v480, 64
    %v496 = vpop.permute.xlu0 %495
    %v498 = vmul.f32 %v493, %v496
    %500 = vrot.lane.b32.xlu0 %v498, 64
    %v501 = vpop.permute.xlu0 %500
    %v503 = vadd.f32 %v486, %v501
    %v504 = vtanh.pop %v503
    %v505 = vsub.f32 1.0, %v493
    %507 = vrot.lane.b32.xlu0 %v504, 96
    %v508 = vpop.permute.xlu0 %507
    %v510 = vmul.f32 %v505, %v508
    %v511 = vmul.f32 %v493, %v437
    %v512 = vadd.f32 %v510, %v511
    %v513 = vpack.c.bf16 %v512, %v512
    %515 = vrot.lane.b32.xlu0 %v513, 96
    %v516 = vpop.permute.xlu0 %515
    %v518 = vsel %vm67, %v516, 0
    %520 = vmatprep.subr.bf16.mxu0 0
    %521 = vmatpush1.bf16.msra.mxu0 %v63
    %522 = vmatprep.subr.bf16.mxu0 0
    %523 = vmatpush1.bf16.msra.mxu0 %v64
    %524 = vmatprep.subr.bf16.mxu0 0
    %525 = vmatpush1.bf16.msra.mxu0 0
    %526 = vmatprep.subr.bf16.mxu0 0
    %527 = vmatpush1.bf16.msra.mxu0 0
    %528 = vmatprep.subr.bf16.mxu0 0
    %529 = vmatpush1.bf16.msra.mxu0 0
    %530 = vmatprep.subr.bf16.mxu0 0
    %531 = vmatpush1.bf16.msra.mxu0 0
    %532 = vmatprep.subr.bf16.mxu0 0
    %533 = vmatpush1.bf16.msra.mxu0 0
    %534 = vmatprep.subr.bf16.mxu0 0
    %535 = vmatpush1.bf16.msra.mxu0 0
    %536 = vmatprep.subr.bf16.mxu0 0
    %537 = vmatpush1.bf16.msra.mxu0 0
    %538 = vmatprep.subr.bf16.mxu0 0
    %539 = vmatpush1.bf16.msra.mxu0 0
    %540 = vmatprep.subr.bf16.mxu0 0
    %541 = vmatpush1.bf16.msra.mxu0 0
    %542 = vmatprep.subr.bf16.mxu0 0
    %543 = vmatpush1.bf16.msra.mxu0 0
    %544 = vmatprep.subr.bf16.mxu0 0
    %545 = vmatpush1.bf16.msra.mxu0 0
    %546 = vmatprep.subr.bf16.mxu0 0
    %547 = vmatpush1.bf16.msra.mxu0 0
    %548 = vmatprep.subr.bf16.mxu0 0
    %549 = vmatpush1.bf16.msra.mxu0 0
    %550 = vmatprep.subr.bf16.mxu0 0
    %551 = vmatpush1.bf16.msra.mxu0 0
    %552 = vmatprep.mubr.bf16.mxu0 0
    %553 = vmatmul.mubr.bf16.gmra.mrb[0].mxu0 %v518
    %v554 = vpop.f32.mrb[0].mxu0
    %v555 = vadd.f32 %v53, %v554
    %v556 = vpop.f32.mrb[0].mxu0
    %v557 = vpop.f32.mrb[0].mxu0
    %v558 = vpop.f32.mrb[0].mxu0
    %559 = vdwg.mxu0
    %s560 = scalar_lea.vmem [#allocation2], 48
    %v561 = vld [vmem:[%s560] sm:$0xff]
    %v562 = vadd.f32 %v561, %v555
    %v563 = vxor.u32 %v562, 2147483648
    %v564 = vmul.f32 %v563, 1.442695
    %v565 = vpow.pop %v564
    %v566 = vadd.f32 %v565, 1.0
    %v567 = vrcp.pop %v566
    %v568 = vmul.f32 1.0, %v567
    %570 = vrot.lane.b32.xlu0 %v555, 64
    %v571 = vpop.permute.xlu0 %570
    %v573 = vmul.f32 %v568, %v571
    %575 = vrot.lane.b32.xlu0 %v573, 64
    %v576 = vpop.permute.xlu0 %575
    %v578 = vadd.f32 %v561, %v576
    %v579 = vtanh.pop %v578
    %v580 = vsub.f32 1.0, %v568
    %582 = vrot.lane.b32.xlu0 %v579, 96
    %v583 = vpop.permute.xlu0 %582
    %v585 = vmul.f32 %v580, %v583
    %v586 = vmul.f32 %v568, %v512
    %v587 = vadd.f32 %v585, %v586
    %v588 = vpack.c.bf16 %v587, %v587
    %590 = vrot.lane.b32.xlu0 %v588, 96
    %v591 = vpop.permute.xlu0 %590
    %v593 = vsel %vm67, %v591, 0
    %595 = vmatprep.subr.bf16.mxu0 0
    %596 = vmatpush1.bf16.msra.mxu0 %v63
    %597 = vmatprep.subr.bf16.mxu0 0
    %598 = vmatpush1.bf16.msra.mxu0 %v64
    %599 = vmatprep.subr.bf16.mxu0 0
    %600 = vmatpush1.bf16.msra.mxu0 0
    %601 = vmatprep.subr.bf16.mxu0 0
    %602 = vmatpush1.bf16.msra.mxu0 0
    %603 = vmatprep.subr.bf16.mxu0 0
    %604 = vmatpush1.bf16.msra.mxu0 0
    %605 = vmatprep.subr.bf16.mxu0 0
    %606 = vmatpush1.bf16.msra.mxu0 0
    %607 = vmatprep.subr.bf16.mxu0 0
    %608 = vmatpush1.bf16.msra.mxu0 0
    %609 = vmatprep.subr.bf16.mxu0 0
    %610 = vmatpush1.bf16.msra.mxu0 0
    %611 = vmatprep.subr.bf16.mxu0 0
    %612 = vmatpush1.bf16.msra.mxu0 0
    %613 = vmatprep.subr.bf16.mxu0 0
    %614 = vmatpush1.bf16.msra.mxu0 0
    %615 = vmatprep.subr.bf16.mxu0 0
    %616 = vmatpush1.bf16.msra.mxu0 0
    %617 = vmatprep.subr.bf16.mxu0 0
    %618 = vmatpush1.bf16.msra.mxu0 0
    %619 = vmatprep.subr.bf16.mxu0 0
    %620 = vmatpush1.bf16.msra.mxu0 0
    %621 = vmatprep.subr.bf16.mxu0 0
    %622 = vmatpush1.bf16.msra.mxu0 0
    %623 = vmatprep.subr.bf16.mxu0 0
    %624 = vmatpush1.bf16.msra.mxu0 0
    %625 = vmatprep.subr.bf16.mxu0 0
    %626 = vmatpush1.bf16.msra.mxu0 0
    %627 = vmatprep.mubr.bf16.mxu0 0
    %628 = vmatmul.mubr.bf16.gmra.mrb[0].mxu0 %v593
    %v629 = vpop.f32.mrb[0].mxu0
    %v630 = vadd.f32 %v53, %v629
    %v631 = vpop.f32.mrb[0].mxu0
    %v632 = vpop.f32.mrb[0].mxu0
    %v633 = vpop.f32.mrb[0].mxu0
    %634 = vdwg.mxu0
    %s635 = scalar_lea.vmem [#allocation2], 56
    %v636 = vld [vmem:[%s635] sm:$0xff]
    %v637 = vadd.f32 %v636, %v630
    %v638 = vxor.u32 %v637, 2147483648
    %v639 = vmul.f32 %v638, 1.442695
    %v640 = vpow.pop %v639
    %v641 = vadd.f32 %v640, 1.0
    %v642 = vrcp.pop %v641
    %v643 = vmul.f32 1.0, %v642
    %645 = vrot.lane.b32.xlu0 %v630, 64
    %v646 = vpop.permute.xlu0 %645
    %v648 = vmul.f32 %v643, %v646
    %650 = vrot.lane.b32.xlu0 %v648, 64
    %v651 = vpop.permute.xlu0 %650
    %v653 = vadd.f32 %v636, %v651
    %v654 = vtanh.pop %v653
    %v655 = vsub.f32 1.0, %v643
    %657 = vrot.lane.b32.xlu0 %v654, 96
    %v658 = vpop.permute.xlu0 %657
    %v660 = vmul.f32 %v655, %v658
    %v661 = vmul.f32 %v643, %v587
    %v662 = vadd.f32 %v660, %v661
    %664 = vrot.lane.b32.xlu0 %v662, 96
    %v665 = vpop.permute.xlu0 %664
    %667 = vst.msk [vmem:[#allocation7] sm:$0xff] %vm67, %v665
    // Predicated region
    $region22: #{tpu_custom_call.1} parent=1 // pred_check
      _
    $region23: #{tpu_custom_call.1} parent=1 // pred_check_branch
      %669 = sbr.rel (0) target = $region25
    $region24: #{tpu_custom_call.1} parent=1 // pred_region
      %s671 = ssub.s32 128, 128
      %672 = vsyncadd [#allocation4], %s671
      %s674 = sshll.u32 [#allocation7], 4
      %s675 = int_to_ptr.vmem [resolvable:$true] %s674
      %677 = dma.vmem_to_hbm [thread:$0]  %s675, 128, %s3, [#allocation4]
    $region25: #{tpu_custom_call.1} parent=1 // pred_fallthru
      _
    // Predicated region
    $region26: #{tpu_custom_call.1} parent=1 // pred_check
      _
    $region27: #{tpu_custom_call.1} parent=1 // pred_check_branch
      %679 = sbr.rel (0) target = $region29
    $region28: #{tpu_custom_call.1} parent=1 // pred_region
      %680 = dma.done [#allocation4], 128
    $region29: #{tpu_custom_call.1} parent=1 // pred_fallthru
      _
    %681 = vsyncpa [#allocation3], 1
    %682 = vsyncpa [#allocation6], 1
    %683 = vsyncpa [#allocation4], 1

</llo_original>
